<compile_context>
chip_gen: v7x
topology: tpu7x:2x2x1
jax: 0.10.0
libtpu: 0.0.40
codegen_flags: <defaults>
</compile_context>

<pallas_src>
import jax
import jax.numpy as jnp
from jax import lax
from jax.experimental import pallas as pl
from jax.experimental.pallas import tpu as pltpu

N_GNET = 50
HIDDEN = 128
SAMPLE_NUM = 50


def generator_kernel(x_ref, w1_ref, b1_ref, w2_ref, b2_ref, o_ref):
    # fc1: (tb, 50) @ (50, 128) on the MXU, f32 accumulate (K=50 padded by Mosaic).
    h = jnp.dot(x_ref[...], w1_ref[...], preferred_element_type=jnp.float32)
    h = h + b1_ref[...]

    # F.normalize(h, dim=1): h / max(||h||, 1e-12)  ==  h * rsqrt(max(ss, 1e-24))
    # (hidden dim is exactly 128 — nothing padded participates in the reduction)
    ss = jnp.sum(h * h, axis=-1, keepdims=True)
    h = h * lax.rsqrt(jnp.maximum(ss, 1e-24))

    # leaky_relu(h, 0.01): single VALU vmax (identical to compare+select).
    h = jnp.maximum(h, 0.01 * h)

    # fc2: (tb, 128) @ (128, 50) -> (tb, 50); f32 accumulate, f32 store.
    out = jnp.dot(h.astype(w2_ref.dtype), w2_ref[...],
                  preferred_element_type=jnp.float32)
    o_ref[...] = (out + b2_ref[...]).astype(o_ref.dtype)


def generator_forward(x, w1, b1, w2, b2, *, block_b=2048, use_bf16=True):
    """x: (B, N_GNET) f32; w1: (HIDDEN, N_GNET); b1: (HIDDEN,);
       w2: (SAMPLE_NUM, HIDDEN); b2: (SAMPLE_NUM,)   (PyTorch layouts)."""
    x = jnp.asarray(x, jnp.float32)
    B = x.shape[0]

    mm_dtype = jnp.bfloat16 if use_bf16 else jnp.float32
    align = 16 if use_bf16 else 8  # sublane packing (bf16 packs 2 rows/sublane)

    # ---- batch tile selection --------------------------------------------
    if B > block_b:
        tb = pl.cdiv(block_b, align) * align
    elif B >= 2 * align:
        # Split into >=2 grid steps so both v7x TensorCores get work.
        tb = pl.cdiv(pl.cdiv(B, 2), align) * align
    else:
        tb = pl.cdiv(B, align) * align
    B_pad = pl.cdiv(B, tb) * tb
    grid_b = B_pad // tb

    # ---- operands (no lane padding; only zero-filled batch-row padding) ----
    x_c = x.astype(mm_dtype)
    if B_pad != B:
        # Keep padded rows zero-filled (numerically inert, no NaN/Inf).
        x_c = jnp.zeros((B_pad, N_GNET), mm_dtype).at[:B].set(x_c)

    w1t = jnp.asarray(w1, jnp.float32).T.astype(mm_dtype)       # (50, 128)
    b1r = jnp.asarray(b1, jnp.float32).reshape(1, HIDDEN)       # (1, 128)
    w2t = jnp.asarray(w2, jnp.float32).T.astype(mm_dtype)       # (128, 50)
    b2r = jnp.asarray(b2, jnp.float32).reshape(1, SAMPLE_NUM)   # (1, 50)

    bytes_per = 2 if use_bf16 else 4
    cost = pl.CostEstimate(
        flops=2 * B_pad * (N_GNET * HIDDEN + HIDDEN * SAMPLE_NUM),
        transcendentals=B_pad,                       # one rsqrt per row
        bytes_accessed=(B_pad * N_GNET * bytes_per   # x
                        + B_pad * SAMPLE_NUM * 4     # out
                        + N_GNET * HIDDEN * bytes_per
                        + HIDDEN * SAMPLE_NUM * bytes_per
                        + HIDDEN * 4 + SAMPLE_NUM * 4),
    )

    out = pl.pallas_call(
        generator_kernel,
        out_shape=jax.ShapeDtypeStruct((B_pad, SAMPLE_NUM), jnp.float32),
        grid=(grid_b,),
        in_specs=[
            pl.BlockSpec((tb, N_GNET), lambda i: (i, 0)),        # x batch tile
            pl.BlockSpec((N_GNET, HIDDEN), lambda i: (0, 0)),    # w1^T (resident)
            pl.BlockSpec((1, HIDDEN), lambda i: (0, 0)),         # b1   (resident)
            pl.BlockSpec((HIDDEN, SAMPLE_NUM), lambda i: (0, 0)),  # w2^T (resident)
            pl.BlockSpec((1, SAMPLE_NUM), lambda i: (0, 0)),     # b2   (resident)
        ],
        out_specs=pl.BlockSpec((tb, SAMPLE_NUM), lambda i: (i, 0)),
        compiler_params=pltpu.CompilerParams(
            dimension_semantics=("parallel",)),
        cost_estimate=cost,
    )(x_c, w1t, b1r, w2t, b2r)

    # Strip batch padding only (output lanes are already exactly SAMPLE_NUM).
    return out if B_pad == B else out[:B]


def init_params(key):
    """Deterministic init mimicking PyTorch nn.Linear default
       (uniform in [-1/sqrt(fan_in), 1/sqrt(fan_in)])."""
    k1, k2, k3, k4 = jax.random.split(key, 4)
    bound1 = 1.0 / jnp.sqrt(N_GNET)
    bound2 = 1.0 / jnp.sqrt(HIDDEN)
    w1 = jax.random.uniform(k1, (HIDDEN, N_GNET), jnp.float32, -bound1, bound1)
    b1 = jax.random.uniform(k2, (HIDDEN,), jnp.float32, -bound1, bound1)
    w2 = jax.random.uniform(k3, (SAMPLE_NUM, HIDDEN), jnp.float32, -bound2, bound2)
    b2 = jax.random.uniform(k4, (SAMPLE_NUM,), jnp.float32, -bound2, bound2)
    return w1, b1, w2, b2


def reference_forward(x, w1, b1, w2, b2):
    """Pure-JAX reference matching the PyTorch semantics."""
    h = x @ w1.T + b1
    norm = jnp.sqrt(jnp.sum(h * h, axis=1, keepdims=True))
    h = h / jnp.maximum(norm, 1e-12)
    h = jnp.where(h > 0, h, 0.01 * h)
    return h @ w2.T + b2


if __name__ == "__main__":
    key = jax.random.PRNGKey(0)
    kx, kp = jax.random.split(key)

    B = 2
    x = jax.random.normal(kx, (B, N_GNET), jnp.float32)
    w1, b1, w2, b2 = init_params(kp)

    ref = reference_forward(x, w1, b1, w2, b2)

    # Default fast path: bf16 MXU operands, f32 accumulate / elementwise.
    out_bf16 = jax.block_until_ready(generator_forward(x, w1, b1, w2, b2))
    assert out_bf16.shape == (B, SAMPLE_NUM)
    assert jnp.allclose(out_bf16, ref, atol=3e-2, rtol=3e-2), "bf16 mismatch"

    # Exact f32 MXU path (e.g. to match a training checkpoint bit-for-bit-ish).
    out_f32 = jax.block_until_ready(
        generator_forward(x, w1, b1, w2, b2, use_bf16=False))
    assert out_f32.shape == (B, SAMPLE_NUM)
    assert jnp.allclose(out_f32, ref, atol=1e-4, rtol=1e-4), "f32 mismatch"

    print("KERNEL_OK")
</pallas_src>

<mosaic_0001>
module attributes {stable_mosaic.version = 11 : i64} {
  func.func @generator_kernel(%arg0: i32, %arg1: memref<16x50xbf16, #tpu.memory_space<vmem>>, %arg2: memref<50x128xbf16, #tpu.memory_space<vmem>>, %arg3: memref<1x128xf32, #tpu.memory_space<vmem>>, %arg4: memref<128x50xbf16, #tpu.memory_space<vmem>>, %arg5: memref<1x50xf32, #tpu.memory_space<vmem>>, %arg6: memref<16x50xf32, #tpu.memory_space<vmem>>) attributes {dimension_semantics = [#tpu.dimension_semantics<parallel>], iteration_bounds = array<i64: 1>, scalar_prefetch = 0 : i64, scratch_operands = 0 : i64, tpu.core_type = #tpu.core_type<tc>, window_params = [{transform_indices = @transform_0, window_bounds = array<i64: 16, 50>}, {pipeline_mode = #tpu.pipeline_mode<synchronous>, transform_indices = @transform_1, window_bounds = array<i64: 50, 128>}, {pipeline_mode = #tpu.pipeline_mode<synchronous>, transform_indices = @transform_2, window_bounds = array<i64: 1, 128>}, {pipeline_mode = #tpu.pipeline_mode<synchronous>, transform_indices = @transform_3, window_bounds = array<i64: 128, 50>}, {pipeline_mode = #tpu.pipeline_mode<synchronous>, transform_indices = @transform_4, window_bounds = array<i64: 1, 50>}, {transform_indices = @transform_5, window_bounds = array<i64: 16, 50>}]} {
    %c0 = arith.constant 0 : index
    %c0_0 = arith.constant 0 : index
    %0 = vector.load %arg1[%c0, %c0_0] : memref<16x50xbf16, #tpu.memory_space<vmem>>, vector<16x50xbf16>
    %c0_1 = arith.constant 0 : index
    %c0_2 = arith.constant 0 : index
    %1 = vector.load %arg2[%c0_1, %c0_2] : memref<50x128xbf16, #tpu.memory_space<vmem>>, vector<50x128xbf16>
    %cst = arith.constant dense<0.000000e+00> : vector<16x128xf32>
    %2 = tpu.matmul %0, %1, %cst {dimension_numbers = #tpu.dot_dimension_numbers<[1], [0], [0], [1], [0, 0, 1, 1], [], []>} : vector<16x50xbf16>, vector<50x128xbf16>, vector<16x128xf32> -> vector<16x128xf32>
    %c0_3 = arith.constant 0 : index
    %c0_4 = arith.constant 0 : index
    %3 = vector.load %arg3[%c0_3, %c0_4] : memref<1x128xf32, #tpu.memory_space<vmem>>, vector<1x128xf32>
    %4 = vector.broadcast %3 : vector<1x128xf32> to vector<16x128xf32>
    %5 = arith.addf %2, %4 : vector<16x128xf32>
    %6 = arith.mulf %5, %5 : vector<16x128xf32>
    %cst_5 = arith.constant dense<0.000000e+00> : vector<16xf32>
    %7 = vector.multi_reduction <add>, %6, %cst_5 [1] : vector<16x128xf32> to vector<16xf32>
    %8 = vector.shape_cast %7 : vector<16xf32> to vector<16x1xf32>
    %cst_6 = arith.constant 1.000000e-24 : f32
    %9 = vector.broadcast %cst_6 : f32 to vector<16x1xf32>
    %10 = arith.maximumf %8, %9 : vector<16x1xf32>
    %11 = math.rsqrt %10 : vector<16x1xf32>
    %12 = vector.broadcast %11 : vector<16x1xf32> to vector<16x128xf32>
    %13 = arith.mulf %5, %12 : vector<16x128xf32>
    %cst_7 = arith.constant 0.00999999977 : f32
    %14 = vector.broadcast %cst_7 : f32 to vector<16x128xf32>
    %15 = arith.mulf %14, %13 : vector<16x128xf32>
    %16 = arith.maximumf %13, %15 : vector<16x128xf32>
    %17 = arith.truncf %16 : vector<16x128xf32> to vector<16x128xbf16>
    %c0_8 = arith.constant 0 : index
    %c0_9 = arith.constant 0 : index
    %18 = vector.load %arg4[%c0_8, %c0_9] : memref<128x50xbf16, #tpu.memory_space<vmem>>, vector<128x50xbf16>
    %cst_10 = arith.constant dense<0.000000e+00> : vector<16x50xf32>
    %19 = tpu.matmul %17, %18, %cst_10 {dimension_numbers = #tpu.dot_dimension_numbers<[1], [0], [0], [1], [0, 0, 1, 1], [], []>} : vector<16x128xbf16>, vector<128x50xbf16>, vector<16x50xf32> -> vector<16x50xf32>
    %c0_11 = arith.constant 0 : index
    %c0_12 = arith.constant 0 : index
    %20 = vector.load %arg5[%c0_11, %c0_12] : memref<1x50xf32, #tpu.memory_space<vmem>>, vector<1x50xf32>
    %21 = vector.broadcast %20 : vector<1x50xf32> to vector<16x50xf32>
    %22 = arith.addf %19, %21 : vector<16x50xf32>
    %c0_13 = arith.constant 0 : index
    %c0_14 = arith.constant 0 : index
    %23 = vector.load %arg6[%c0_13, %c0_14] : memref<16x50xf32, #tpu.memory_space<vmem>>, vector<16x50xf32>
    tpu.vector_store %arg6[%c0_13, %c0_14], %22 {strides = array<i32>} : memref<16x50xf32, #tpu.memory_space<vmem>>, vector<16x50xf32>,
    return
  }
  func.func @transform_0(%arg0: i32) -> (i32, i32) {
    %c0_i32 = arith.constant 0 : i32
    %c0_i32_0 = arith.constant 0 : i32
    return %arg0, %c0_i32 : i32, i32
  }
  func.func @transform_1(%arg0: i32) -> (i32, i32) {
    %c0_i32 = arith.constant 0 : i32
    %c0_i32_0 = arith.constant 0 : i32
    %c0_i32_1 = arith.constant 0 : i32
    return %c0_i32, %c0_i32_0 : i32, i32
  }
  func.func @transform_2(%arg0: i32) -> (i32, i32) {
    %c0_i32 = arith.constant 0 : i32
    %c0_i32_0 = arith.constant 0 : i32
    %c0_i32_1 = arith.constant 0 : i32
    return %c0_i32, %c0_i32_0 : i32, i32
  }
  func.func @transform_3(%arg0: i32) -> (i32, i32) {
    %c0_i32 = arith.constant 0 : i32
    %c0_i32_0 = arith.constant 0 : i32
    %c0_i32_1 = arith.constant 0 : i32
    return %c0_i32, %c0_i32_0 : i32, i32
  }
  func.func @transform_4(%arg0: i32) -> (i32, i32) {
    %c0_i32 = arith.constant 0 : i32
    %c0_i32_0 = arith.constant 0 : i32
    %c0_i32_1 = arith.constant 0 : i32
    return %c0_i32, %c0_i32_0 : i32, i32
  }
  func.func @transform_5(%arg0: i32) -> (i32, i32) {
    %c0_i32 = arith.constant 0 : i32
    %c0_i32_0 = arith.constant 0 : i32
    return %arg0, %c0_i32 : i32, i32
  }
}

</mosaic_0001>

<llo_original>
// kernel: tpu_custom_call.1
$region0: #{tpu_custom_call.1}
  #allocation0 [shape = 'u32[]', space=smem, size = 0x4, offset = 0x4, fixed_abs, tag = 'smem constant byte address 0x4 - core index']
  #allocation1 [shape = 'u32[144,128]{1,0:T(1,128)}', space=vmem, size = 0x12000, scoped, tag = 'internal scratch']
  %s0 = inlined_call_operand.vmem [shape: bf16[16,50], index: 0, kind: input, shape index: {}]
  %s1 = inlined_call_operand.vmem [shape: bf16[50,128], index: 1, kind: input, shape index: {}]
  %s2 = inlined_call_operand.vmem [shape: f32[1,128], index: 2, kind: input, shape index: {}]
  %s3 = inlined_call_operand.vmem [shape: bf16[128,50], index: 3, kind: input, shape index: {}]
  %s4 = inlined_call_operand.vmem [shape: f32[1,50], index: 4, kind: input, shape index: {}]
  %s5 = inlined_call_operand.hbm [shape: f32[16,50], index: 5, kind: output, shape index: {}]
  %s6 = sld [smem:[#allocation0]]
  $region30: #{tpu_custom_call.1} parent=0
    _
  %s8 = ssub.s32 1, %s6
  %s9 = scalar_select 0, %s8, %s6
  $region1: #{tpu_custom_call.1} parent=0
    #allocation2 [shape = 'u8[8192]{0}', space=vmem, size = 0x2000, scoped, tag = 'output window, operand 0, single buffered']
    #allocation3 [shape = 's32[1]{0}', space=sflag, size = 0x4, scoped, tag = 'scoped memory for tpu_custom_call.1']
    %10 = vsyncpa [#allocation3], 0
    // Predicated region
    $region2: #{tpu_custom_call.1} parent=1 // pred_check
      _
    $region3: #{tpu_custom_call.1} parent=1 // pred_check_branch
      %12 = sbr.rel (0) target = $region5
    $region4: #{tpu_custom_call.1} parent=1 // pred_region
      _
    $region5: #{tpu_custom_call.1} parent=1 // pred_fallthru
      _
    // Predicated region
    $region6: #{tpu_custom_call.1} parent=1 // pred_check
      _
    $region7: #{tpu_custom_call.1} parent=1 // pred_check_branch
      %14 = sbr.rel (0) target = $region9
    $region8: #{tpu_custom_call.1} parent=1 // pred_region
      _
    $region9: #{tpu_custom_call.1} parent=1 // pred_fallthru
      _
    // Predicated region
    $region10: #{tpu_custom_call.1} parent=1 // pred_check
      _
    $region11: #{tpu_custom_call.1} parent=1 // pred_check_branch
      %16 = sbr.rel (0) target = $region13
    $region12: #{tpu_custom_call.1} parent=1 // pred_region
      _
    $region13: #{tpu_custom_call.1} parent=1 // pred_fallthru
      _
    // Predicated region
    $region14: #{tpu_custom_call.1} parent=1 // pred_check
      _
    $region15: #{tpu_custom_call.1} parent=1 // pred_check_branch
      %18 = sbr.rel (0) target = $region17
    $region16: #{tpu_custom_call.1} parent=1 // pred_region
      _
    $region17: #{tpu_custom_call.1} parent=1 // pred_fallthru
      _
    // Predicated region
    $region18: #{tpu_custom_call.1} parent=1 // pred_check
      _
    $region19: #{tpu_custom_call.1} parent=1 // pred_check_branch
      %20 = sbr.rel (0) target = $region21
    $region20: #{tpu_custom_call.1} parent=1 // pred_region
      _
    $region21: #{tpu_custom_call.1} parent=1 // pred_fallthru
      _
    %v22 = vld [vmem:[%s0] sm:$0xf]
    %v23 = vld [vmem:[%s0 + $0x4] sm:$0xf]
    %v24 = vld [vmem:[%s1] sm:$0xf]
    %v25 = vld [vmem:[%s1 + $0x4] sm:$0xf]
    %v26 = vld [vmem:[%s1 + $0x8] sm:$0xf]
    %v27 = vld [vmem:[%s1 + $0xc] sm:$0xf]
    %v28 = vld [vmem:[%s1 + $0x10] sm:$0xf]
    %v29 = vld [vmem:[%s1 + $0x14] sm:$0xf]
    %v30 = vld [vmem:[%s1 + $0x18] sm:$0x1]
    %v31 = vld [vmem:[%s2] sm:$0x1]
    %v33 = vlaneseq
    %v34 = vshrl.u32 %v33, 7
    %v35 = vsub.s32 0, %v34
    %v36 = vrot.slane %v31, %v35
    %v40 = vunpack.c.l.b16 %v22
    %v41 = vunpack.c.l.b16 %v23
    %v42 = vpack.c.b16 %v41, %v40
    %v50 = vunpack.c.l.b16 %v24
    %v51 = vunpack.c.l.b16 %v25
    %v52 = vunpack.c.l.b16 %v26
    %v53 = vunpack.c.l.b16 %v27
    %v54 = vunpack.c.l.b16 %v28
    %v55 = vunpack.c.l.b16 %v29
    %v56 = vunpack.c.l.b16 %v30
    %v57 = vpack.c.b16 %v51, %v50
    %v58 = vpack.c.b16 %v53, %v52
    %v59 = vpack.c.b16 %v55, %v54
    %v60 = vpack.c.b16 %v56, %v56
    %vm64 = vcmask 408576
    %v66 = vsel %vm64, %v42, 0
    %vm68 = vcmask 1040384
    %v70 = vsel %vm68, %v60, 0
    %72 = vmatprep.subr.bf16.mxu0 0
    %73 = vmatpush1.bf16.msra.mxu0 %v57
    %74 = vmatprep.subr.bf16.mxu0 0
    %75 = vmatpush1.bf16.msra.mxu0 %v58
    %76 = vmatprep.subr.bf16.mxu0 0
    %77 = vmatpush1.bf16.msra.mxu0 %v59
    %78 = vmatprep.subr.bf16.mxu0 0
    %79 = vmatpush1.bf16.msra.mxu0 %v70
    %80 = vmatprep.subr.bf16.mxu0 0
    %81 = vmatpush1.bf16.msra.mxu0 0
    %82 = vmatprep.subr.bf16.mxu0 0
    %83 = vmatpush1.bf16.msra.mxu0 0
    %84 = vmatprep.subr.bf16.mxu0 0
    %85 = vmatpush1.bf16.msra.mxu0 0
    %86 = vmatprep.subr.bf16.mxu0 0
    %87 = vmatpush1.bf16.msra.mxu0 0
    %88 = vmatprep.subr.bf16.mxu0 0
    %89 = vmatpush1.bf16.msra.mxu0 0
    %90 = vmatprep.subr.bf16.mxu0 0
    %91 = vmatpush1.bf16.msra.mxu0 0
    %92 = vmatprep.subr.bf16.mxu0 0
    %93 = vmatpush1.bf16.msra.mxu0 0
    %94 = vmatprep.subr.bf16.mxu0 0
    %95 = vmatpush1.bf16.msra.mxu0 0
    %96 = vmatprep.subr.bf16.mxu0 0
    %97 = vmatpush1.bf16.msra.mxu0 0
    %98 = vmatprep.subr.bf16.mxu0 0
    %99 = vmatpush1.bf16.msra.mxu0 0
    %100 = vmatprep.subr.bf16.mxu0 0
    %101 = vmatpush1.bf16.msra.mxu0 0
    %102 = vmatprep.subr.bf16.mxu0 0
    %103 = vmatpush1.bf16.msra.mxu0 0
    %104 = vmatprep.mubr.bf16.mxu0 0
    %105 = vmatmul.mubr.bf16.gmra.mrb[0].mxu0 %v66
    %v106 = vpop.f32.mrb[0].mxu0
    %v107 = vadd.f32 %v36, %v106
    %v108 = vpop.f32.mrb[0].mxu0
    %v109 = vpop.f32.mrb[0].mxu0
    %v110 = vadd.f32 %v36, %v109
    %v111 = vpop.f32.mrb[0].mxu0
    %112 = vdwg.mxu0
    %v113 = vmul.f32 %v107, %v107
    %v114 = vmul.f32 %v110, %v110
    %115 = vadd.xlane.f32.xlu0 %v113
    %v116 = vpop.xlane.xlu0 %115
    %117 = vadd.xlane.f32.xlu0 %v114
    %v118 = vpop.xlane.xlu0 %117
    %v119 = vmax.f32 %v116, 1e-24
    %v120 = vmax.f32 %v118, 1e-24
    %v121 = vrsqrt.pop %v119
    %v122 = vrsqrt.pop %v120
    %v123 = vmul.f32 %v107, %v121
    %v124 = vmul.f32 %v110, %v122
    %v125 = vmul.f32 %v123, 0.01
    %v126 = vmul.f32 %v124, 0.01
    %v127 = vmax.f32 %v123, %v125
    %v128 = vmax.f32 %v124, %v126
    %v129 = vpack.c.bf16 %v128, %v127
    %v130 = vld [vmem:[%s3] sm:$0xf]
    %v131 = vld [vmem:[%s3 + $0x4] sm:$0xf]
    %v132 = vld [vmem:[%s3 + $0x8] sm:$0xf]
    %v133 = vld [vmem:[%s3 + $0xc] sm:$0xf]
    %v134 = vld [vmem:[%s3 + $0x10] sm:$0xf]
    %v135 = vld [vmem:[%s3 + $0x14] sm:$0xf]
    %v136 = vld [vmem:[%s3 + $0x18] sm:$0xf]
    %v137 = vld [vmem:[%s3 + $0x1c] sm:$0xf]
    %v138 = vld [vmem:[%s3 + $0x20] sm:$0xf]
    %v139 = vld [vmem:[%s3 + $0x24] sm:$0xf]
    %v140 = vld [vmem:[%s3 + $0x28] sm:$0xf]
    %v141 = vld [vmem:[%s3 + $0x2c] sm:$0xf]
    %v142 = vld [vmem:[%s3 + $0x30] sm:$0xf]
    %v143 = vld [vmem:[%s3 + $0x34] sm:$0xf]
    %v144 = vld [vmem:[%s3 + $0x38] sm:$0xf]
    %v145 = vld [vmem:[%s3 + $0x3c] sm:$0xf]
    %v146 = vld [vmem:[%s4] sm:$0x1]
    %v148 = vlaneseq
    %v149 = vshrl.u32 %v148, 7
    %v150 = vsub.s32 0, %v149
    %v151 = vrot.slane %v146, %v150
    %v169 = vunpack.c.l.b16 %v130
    %v170 = vunpack.c.l.b16 %v131
    %v171 = vunpack.c.l.b16 %v132
    %v172 = vunpack.c.l.b16 %v133
    %v173 = vunpack.c.l.b16 %v134
    %v174 = vunpack.c.l.b16 %v135
    %v175 = vunpack.c.l.b16 %v136
    %v176 = vunpack.c.l.b16 %v137
    %v177 = vunpack.c.l.b16 %v138
    %v178 = vunpack.c.l.b16 %v139
    %v179 = vunpack.c.l.b16 %v140
    %v180 = vunpack.c.l.b16 %v141
    %v181 = vunpack.c.l.b16 %v142
    %v182 = vunpack.c.l.b16 %v143
    %v183 = vunpack.c.l.b16 %v144
    %v184 = vunpack.c.l.b16 %v145
    %v185 = vpack.c.b16 %v170, %v169
    %v186 = vpack.c.b16 %v172, %v171
    %v187 = vpack.c.b16 %v174, %v173
    %v188 = vpack.c.b16 %v176, %v175
    %v189 = vpack.c.b16 %v178, %v177
    %v190 = vpack.c.b16 %v180, %v179
    %v191 = vpack.c.b16 %v182, %v181
    %v192 = vpack.c.b16 %v184, %v183
    %201 = vmatprep.subr.bf16.mxu0 0
    %202 = vmatpush1.bf16.msra.mxu0 %v185
    %203 = vmatprep.subr.bf16.mxu0 0
    %204 = vmatpush1.bf16.msra.mxu0 %v186
    %205 = vmatprep.subr.bf16.mxu0 0
    %206 = vmatpush1.bf16.msra.mxu0 %v187
    %207 = vmatprep.subr.bf16.mxu0 0
    %208 = vmatpush1.bf16.msra.mxu0 %v188
    %209 = vmatprep.subr.bf16.mxu0 0
    %210 = vmatpush1.bf16.msra.mxu0 %v189
    %211 = vmatprep.subr.bf16.mxu0 0
    %212 = vmatpush1.bf16.msra.mxu0 %v190
    %213 = vmatprep.subr.bf16.mxu0 0
    %214 = vmatpush1.bf16.msra.mxu0 %v191
    %215 = vmatprep.subr.bf16.mxu0 0
    %216 = vmatpush1.bf16.msra.mxu0 %v192
    %217 = vmatprep.subr.bf16.mxu0 0
    %218 = vmatpush1.bf16.msra.mxu0 0
    %219 = vmatprep.subr.bf16.mxu0 0
    %220 = vmatpush1.bf16.msra.mxu0 0
    %221 = vmatprep.subr.bf16.mxu0 0
    %222 = vmatpush1.bf16.msra.mxu0 0
    %223 = vmatprep.subr.bf16.mxu0 0
    %224 = vmatpush1.bf16.msra.mxu0 0
    %225 = vmatprep.subr.bf16.mxu0 0
    %226 = vmatpush1.bf16.msra.mxu0 0
    %227 = vmatprep.subr.bf16.mxu0 0
    %228 = vmatpush1.bf16.msra.mxu0 0
    %229 = vmatprep.subr.bf16.mxu0 0
    %230 = vmatpush1.bf16.msra.mxu0 0
    %231 = vmatprep.subr.bf16.mxu0 0
    %232 = vmatpush1.bf16.msra.mxu0 0
    %233 = vmatprep.mubr.bf16.mxu0 0
    %234 = vmatmul.mubr.bf16.gmra.mrb[0].mxu0 %v129
    %v235 = vpop.f32.mrb[0].mxu0
    %v236 = vadd.f32 %v151, %v235
    %v237 = vpop.f32.mrb[0].mxu0
    %v238 = vpop.f32.mrb[0].mxu0
    %v239 = vadd.f32 %v151, %v238
    %v240 = vpop.f32.mrb[0].mxu0
    %241 = vdwg.mxu0
    %242 = vst.msk [vmem:[#allocation2] sm:$0xff] %vm64, %v236
    %243 = vst.msk [vmem:[#allocation2 + $0x8] sm:$0xff] %vm64, %v239
    // Predicated region
    $region22: #{tpu_custom_call.1} parent=1 // pred_check
      _
    $region23: #{tpu_custom_call.1} parent=1 // pred_check_branch
      %245 = sbr.rel (0) target = $region25
    $region24: #{tpu_custom_call.1} parent=1 // pred_region
      %s247 = ssub.s32 256, 256
      %248 = vsyncadd [#allocation3], %s247
      %s249 = sshll.u32 [#allocation2], 4
      %s250 = int_to_ptr.vmem [resolvable:$true] %s249
      %255 = dma.vmem_to_hbm [thread:$0]  %s250, 256, %s5, [#allocation3], 128, 128, 8
    $region25: #{tpu_custom_call.1} parent=1 // pred_fallthru
      _
    // Predicated region
    $region26: #{tpu_custom_call.1} parent=1 // pred_check
      _
    $region27: #{tpu_custom_call.1} parent=1 // pred_check_branch
      %257 = sbr.rel (0) target = $region29
    $region28: #{tpu_custom_call.1} parent=1 // pred_region
      %258 = dma.done [#allocation3], 256
    $region29: #{tpu_custom_call.1} parent=1 // pred_fallthru
      _
    %259 = vsyncpa [#allocation3], 1

</llo_original>
